<compile_context>
chip_gen: v6e
topology: v6e:2x2x1
jax: 0.10.0
libtpu: 0.0.40
codegen_flags: <defaults>
</compile_context>

<pallas_src>
import jax
import jax.numpy as jnp
from jax.experimental import pallas as pl
from jax.experimental.pallas import tpu as pltpu

H1, H2 = 400, 300      # logical hidden sizes (match the PyTorch module)
H1P, H2P = 512, 384    # lane-padded hidden sizes (multiples of 128)


def _critic_kernel(s_ref, ap_ref, w1_ref, b1_ref, w2_ref, b2_ref,
                   w3_ref, b3_ref, out_ref):
    # Layer 1 (MXU): relu(state @ W1 + b1).  Padded lanes [H1, H1P) have zero
    # weights + zero bias, so q1[:, H1:] == 0 exactly after the relu.
    q1 = jnp.dot(s_ref[...], w1_ref[...], preferred_element_type=jnp.float32)
    q1 = jnp.maximum(q1 + b1_ref[...], 0.0)

    # Fold cat([q1, action], 1) into the K dimension: `ap` holds the action in
    # lanes [H1, H1 + action_dim) and zeros elsewhere -> one VPU add.
    x2 = q1 + ap_ref[...]

    # Layer 2: single MXU matmul (K = H1P, N = H2P), bias + relu on the VPU.
    q2 = jnp.dot(x2, w2_ref[...], preferred_element_type=jnp.float32)
    q2 = jnp.maximum(q2 + b2_ref[...], 0.0)

    # Layer 3 (N = 1): keep it off the MXU -- VPU multiply + lane reduction.
    out_ref[...] = (jnp.sum(q2 * w3_ref[...], axis=-1, keepdims=True)
                    + b3_ref[...])


def critic_forward(state, action, params, *, batch_tile=None):
    """state: (B, state_dim) f32, action: (B, action_dim) f32 -> (B, 1) f32."""
    w1p, b1p, w2p, b2p, w3p, b3p = params
    B, state_dim = state.shape
    action_dim = action.shape[1]

    # Host-side layout plumbing: drop the action into K-lanes [H1, H1+action_dim).
    ap = jnp.zeros((B, H1P), state.dtype).at[:, H1:H1 + action_dim].set(action)
    operands = (state, ap, w1p, b1p, w2p, b2p, w3p, b3p)

    out_shape = jax.ShapeDtypeStruct((B, 1), jnp.float32)

    if batch_tile is None or B <= batch_tile:
        # Gridless: everything sits in VMEM for the whole (single-step) call.
        vmem = pl.BlockSpec(memory_space=pltpu.MemorySpace.VMEM)
        return pl.pallas_call(
            _critic_kernel,
            out_shape=out_shape,
            in_specs=[vmem] * len(operands),
            out_specs=vmem,
        )(*operands)

    assert B % batch_tile == 0, (B, batch_tile)

    def resident(arr):
        # Same block index every grid step -> weights stay VMEM-resident.
        return pl.BlockSpec(arr.shape, lambda i: (0, 0))

    return pl.pallas_call(
        _critic_kernel,
        out_shape=out_shape,
        grid=(B // batch_tile,),
        in_specs=[
            pl.BlockSpec((batch_tile, state_dim), lambda i: (i, 0)),
            pl.BlockSpec((batch_tile, H1P), lambda i: (i, 0)),
            resident(w1p), resident(b1p), resident(w2p), resident(b2p),
            resident(w3p), resident(b3p),
        ],
        out_specs=pl.BlockSpec((batch_tile, 1), lambda i: (i, 0)),
        compiler_params=pltpu.CompilerParams(
            dimension_semantics=("parallel",)),
    )(*operands)


def init_critic_params(key, state_dim, action_dim):
    """PyTorch Linear-style init (U(-1/sqrt(fan_in), 1/sqrt(fan_in))), returned
    pre-transposed, lane-padded, with the l2 action rows packed at rows
    [H1, H1 + action_dim) of the single W2 matrix."""
    ks = jax.random.split(key, 6)

    def uniform(k, shape, fan_in):
        bound = 1.0 / jnp.sqrt(jnp.float32(fan_in))
        return jax.random.uniform(k, shape, jnp.float32, -bound, bound)

    w1 = uniform(ks[0], (state_dim, H1), state_dim)        # l1 weight^T
    b1 = uniform(ks[1], (1, H1), state_dim)
    fan2 = H1 + action_dim
    w2 = uniform(ks[2], (fan2, H2), fan2)                  # l2 weight^T (q rows then action rows)
    b2 = uniform(ks[3], (1, H2), fan2)
    w3 = uniform(ks[4], (1, H2), H2)                       # l3 weight as a row vector
    b3 = uniform(ks[5], (1, 1), H2)

    # Lane-padded / packed versions consumed by the kernel.
    w1p = jnp.zeros((state_dim, H1P), jnp.float32).at[:, :H1].set(w1)
    b1p = jnp.zeros((1, H1P), jnp.float32).at[:, :H1].set(b1)
    w2p = jnp.zeros((H1P, H2P), jnp.float32).at[:H1 + action_dim, :H2].set(w2)
    b2p = jnp.zeros((1, H2P), jnp.float32).at[:, :H2].set(b2)
    w3p = jnp.zeros((1, H2P), jnp.float32).at[:, :H2].set(w3)
    b3p = b3
    return (w1p, b1p, w2p, b2p, w3p, b3p)


def critic_reference(state, action, params):
    """Plain-JAX forward matching the PyTorch module exactly (unpacks the
    padded kernel params back to their logical shapes)."""
    w1p, b1p, w2p, b2p, w3p, b3p = params
    action_dim = action.shape[1]
    w1, b1 = w1p[:, :H1], b1p[:, :H1]
    w2, b2 = w2p[:H1 + action_dim, :H2], b2p[:, :H2]
    w3, b3 = w3p[:, :H2].T, b3p
    q = jax.nn.relu(state @ w1 + b1)
    q = jax.nn.relu(jnp.concatenate([q, action], axis=1) @ w2 + b2)
    return q @ w3 + b3


if __name__ == "__main__":
    state_dim, action_dim = 16, 4
    key = jax.random.PRNGKey(0)
    k_params, k_state, k_action = jax.random.split(key, 3)
    params = init_critic_params(k_params, state_dim, action_dim)

    # Small latency-style batch: gridless call, everything VMEM resident.
    B = 8
    state = jax.random.normal(k_state, (B, state_dim), jnp.float32)
    action = jax.random.normal(k_action, (B, action_dim), jnp.float32)
    out = jax.block_until_ready(critic_forward(state, action, params))
    ref = critic_reference(state, action, params)
    assert out.shape == (B, 1), out.shape
    assert jnp.allclose(out, ref, atol=1e-4, rtol=1e-4), (out, ref)

    # Larger training-style batch: gridded over batch with VMEM-resident
    # weights and a "parallel" batch axis (shards across v7x's two TCs).
    Bb = 256
    kb_s, kb_a = jax.random.split(jax.random.PRNGKey(1), 2)
    state_b = jax.random.normal(kb_s, (Bb, state_dim), jnp.float32)
    action_b = jax.random.normal(kb_a, (Bb, action_dim), jnp.float32)
    out_b = jax.block_until_ready(
        critic_forward(state_b, action_b, params, batch_tile=128))
    ref_b = critic_reference(state_b, action_b, params)
    assert out_b.shape == (Bb, 1), out_b.shape
    assert jnp.allclose(out_b, ref_b, atol=1e-4, rtol=1e-4), (out_b, ref_b)

    print("KERNEL_OK")
</pallas_src>

<mosaic_0001>
module attributes {stable_mosaic.version = 11 : i64} {
  func.func @_critic_kernel(%arg0: memref<8x16xf32, #tpu.memory_space<vmem>>, %arg1: memref<8x512xf32, #tpu.memory_space<vmem>>, %arg2: memref<16x512xf32, #tpu.memory_space<vmem>>, %arg3: memref<1x512xf32, #tpu.memory_space<vmem>>, %arg4: memref<512x384xf32, #tpu.memory_space<vmem>>, %arg5: memref<1x384xf32, #tpu.memory_space<vmem>>, %arg6: memref<1x384xf32, #tpu.memory_space<vmem>>, %arg7: memref<1x1xf32, #tpu.memory_space<vmem>>, %arg8: memref<8x1xf32, #tpu.memory_space<vmem>>) attributes {dimension_semantics = [], scalar_prefetch = 0 : i64, scratch_operands = 0 : i64, tpu.core_type = #tpu.core_type<tc>} {
    %c0 = arith.constant 0 : index
    %c0_0 = arith.constant 0 : index
    %0 = vector.load %arg0[%c0, %c0_0] : memref<8x16xf32, #tpu.memory_space<vmem>>, vector<8x16xf32>
    %c0_1 = arith.constant 0 : index
    %c0_2 = arith.constant 0 : index
    %1 = vector.load %arg2[%c0_1, %c0_2] : memref<16x512xf32, #tpu.memory_space<vmem>>, vector<16x512xf32>
    %cst = arith.constant dense<0.000000e+00> : vector<8x512xf32>
    %2 = tpu.matmul %0, %1, %cst {dimension_numbers = #tpu.dot_dimension_numbers<[1], [0], [0], [1], [0, 0, 1, 1], [], []>} : vector<8x16xf32>, vector<16x512xf32>, vector<8x512xf32> -> vector<8x512xf32>
    %c0_3 = arith.constant 0 : index
    %c0_4 = arith.constant 0 : index
    %3 = vector.load %arg3[%c0_3, %c0_4] : memref<1x512xf32, #tpu.memory_space<vmem>>, vector<1x512xf32>
    %4 = vector.broadcast %3 : vector<1x512xf32> to vector<8x512xf32>
    %5 = arith.addf %2, %4 : vector<8x512xf32>
    %cst_5 = arith.constant 0.000000e+00 : f32
    %6 = vector.broadcast %cst_5 : f32 to vector<8x512xf32>
    %7 = arith.maximumf %5, %6 : vector<8x512xf32>
    %c0_6 = arith.constant 0 : index
    %c0_7 = arith.constant 0 : index
    %8 = vector.load %arg1[%c0_6, %c0_7] : memref<8x512xf32, #tpu.memory_space<vmem>>, vector<8x512xf32>
    %9 = arith.addf %7, %8 : vector<8x512xf32>
    %c0_8 = arith.constant 0 : index
    %c0_9 = arith.constant 0 : index
    %10 = vector.load %arg4[%c0_8, %c0_9] : memref<512x384xf32, #tpu.memory_space<vmem>>, vector<512x384xf32>
    %cst_10 = arith.constant dense<0.000000e+00> : vector<8x384xf32>
    %11 = tpu.matmul %9, %10, %cst_10 {dimension_numbers = #tpu.dot_dimension_numbers<[1], [0], [0], [1], [0, 0, 1, 1], [], []>} : vector<8x512xf32>, vector<512x384xf32>, vector<8x384xf32> -> vector<8x384xf32>
    %c0_11 = arith.constant 0 : index
    %c0_12 = arith.constant 0 : index
    %12 = vector.load %arg5[%c0_11, %c0_12] : memref<1x384xf32, #tpu.memory_space<vmem>>, vector<1x384xf32>
    %13 = vector.broadcast %12 : vector<1x384xf32> to vector<8x384xf32>
    %14 = arith.addf %11, %13 : vector<8x384xf32>
    %cst_13 = arith.constant 0.000000e+00 : f32
    %15 = vector.broadcast %cst_13 : f32 to vector<8x384xf32>
    %16 = arith.maximumf %14, %15 : vector<8x384xf32>
    %c0_14 = arith.constant 0 : index
    %c0_15 = arith.constant 0 : index
    %17 = vector.load %arg6[%c0_14, %c0_15] : memref<1x384xf32, #tpu.memory_space<vmem>>, vector<1x384xf32>
    %18 = vector.broadcast %17 : vector<1x384xf32> to vector<8x384xf32>
    %19 = arith.mulf %16, %18 : vector<8x384xf32>
    %cst_16 = arith.constant dense<0.000000e+00> : vector<8xf32>
    %20 = vector.multi_reduction <add>, %19, %cst_16 [1] : vector<8x384xf32> to vector<8xf32>
    %21 = vector.shape_cast %20 : vector<8xf32> to vector<8x1xf32>
    %c0_17 = arith.constant 0 : index
    %c0_18 = arith.constant 0 : index
    %22 = vector.load %arg7[%c0_17, %c0_18] : memref<1x1xf32, #tpu.memory_space<vmem>>, vector<1x1xf32>
    %23 = vector.broadcast %22 : vector<1x1xf32> to vector<8x1xf32>
    %24 = arith.addf %21, %23 : vector<8x1xf32>
    %c0_19 = arith.constant 0 : index
    %c0_20 = arith.constant 0 : index
    %25 = vector.load %arg8[%c0_19, %c0_20] : memref<8x1xf32, #tpu.memory_space<vmem>>, vector<8x1xf32>
    tpu.vector_store %arg8[%c0_19, %c0_20], %24 {strides = array<i32>} : memref<8x1xf32, #tpu.memory_space<vmem>>, vector<8x1xf32>,
    return
  }
}

</mosaic_0001>

<llo_original>
// kernel: tpu_custom_call.1
$region0: #{tpu_custom_call.1}
  #allocation0 [shape = 'u32[]', space=smem, size = 0x4, offset = 0x4, fixed_abs, tag = 'smem constant byte address 0x4 - core index']
  #allocation1 [shape = 'u32[144,128]{1,0:T(1,128)}', space=vmem, size = 0x12000, scoped, tag = 'internal scratch']
  #allocation2 [shape = 'f32[1,1]{1,0:T(1,128)S(1)}', space=vmem, size = 0x200, scoped, tag = 'scoped memory for tpu_custom_call.1']
  %s0 = inlined_call_operand.hbm [shape: f32[8,16], index: 0, kind: input, shape index: {}]
  %s1 = inlined_call_operand.hbm [shape: f32[8,512], index: 1, kind: input, shape index: {}]
  %s2 = inlined_call_operand.hbm [shape: f32[16,512], index: 2, kind: input, shape index: {}]
  %s3 = inlined_call_operand.vmem [shape: f32[1,512], index: 3, kind: input, shape index: {}]
  %s4 = inlined_call_operand.hbm [shape: f32[512,384], index: 4, kind: input, shape index: {}]
  %s5 = inlined_call_operand.vmem [shape: f32[1,384], index: 5, kind: input, shape index: {}]
  %s6 = inlined_call_operand.vmem [shape: f32[1,384], index: 6, kind: input, shape index: {}]
  %s7 = inlined_call_operand.<no memory space> [shape: f32[1,1], index: 7, kind: input, shape index: {}]
  %s8 = inlined_call_operand.vmem [shape: f32[8,1], index: 8, kind: output, shape index: {}]
  %s9 = sld [smem:[#allocation0]]
  $region58: #{tpu_custom_call.1} parent=0
    _
  %s11 = ssub.s32 1, %s9
  %s12 = scalar_select 0, %s11, %s9
  %v13 = vstv %s7
  %14 = vst [vmem:[#allocation2] sm:$0x1] %v13
  $region1: #{tpu_custom_call.1} parent=0
    #allocation3 [shape = 'u8[4096]{0}', space=vmem, size = 0x1000, scoped, tag = 'input window, operand 0, single buffered']
    #allocation4 [shape = 's32[1]{0}', space=sflag, size = 0x4, scoped, tag = 'scoped memory for tpu_custom_call.1']
    #allocation5 [shape = 'u8[16384]{0}', space=vmem, size = 0x4000, scoped, tag = 'input window, operand 1, single buffered']
    #allocation6 [shape = 's32[1]{0}', space=sflag, size = 0x4, scoped, tag = 'scoped memory for tpu_custom_call.1']
    #allocation7 [shape = 'u8[32768]{0}', space=vmem, size = 0x8000, scoped, tag = 'input window, operand 2, single buffered']
    #allocation8 [shape = 'u8[786432]{0}', space=vmem, size = 0xc0000, scoped, tag = 'input window, operand 4, single buffered']
    #allocation9 [shape = 's32[1]{0}', space=sflag, size = 0x4, scoped, tag = 'scoped memory for tpu_custom_call.1']
    %15 = vsyncpa [#allocation4], 0
    %16 = vsyncpa [#allocation6], 0
    %17 = vsyncpa [#allocation9], 0
    // Predicated region
    $region2: #{tpu_custom_call.1} parent=1 // pred_check
      _
    $region3: #{tpu_custom_call.1} parent=1 // pred_check_branch
      %19 = sbr.rel (0) target = $region5
    $region4: #{tpu_custom_call.1} parent=1 // pred_region
      %s21 = ssub.s32 128, 128
      %22 = vsyncadd [#allocation4], %s21
      %s24 = sshll.u32 [#allocation3], 4
      %s25 = int_to_ptr.vmem [resolvable:$true] %s24
      %27 = dma.hbm_to_vmem [thread:$0]  %s0, 128, %s25, [#allocation4]
    $region5: #{tpu_custom_call.1} parent=1 // pred_fallthru
      _
    // Predicated region
    $region6: #{tpu_custom_call.1} parent=1 // pred_check
      _
    $region7: #{tpu_custom_call.1} parent=1 // pred_check_branch
      %29 = sbr.rel (0) target = $region9
    $region8: #{tpu_custom_call.1} parent=1 // pred_region
      %s31 = ssub.s32 512, 512
      %32 = vsyncadd [#allocation6], %s31
      %s34 = sshll.u32 [#allocation5], 4
      %s35 = int_to_ptr.vmem [resolvable:$true] %s34
      %37 = dma.hbm_to_vmem [thread:$0]  %s1, 512, %s35, [#allocation6]
    $region9: #{tpu_custom_call.1} parent=1 // pred_fallthru
      _
    // Predicated region
    $region10: #{tpu_custom_call.1} parent=1 // pred_check
      _
    $region11: #{tpu_custom_call.1} parent=1 // pred_check_branch
      %39 = sbr.rel (0) target = $region13
    $region12: #{tpu_custom_call.1} parent=1 // pred_region
      %s41 = ssub.s32 1024, 1024
      %42 = vsyncadd [#allocation6], %s41
      %s43 = sshll.u32 [#allocation7], 4
      %s44 = int_to_ptr.vmem [resolvable:$true] %s43
      %49 = dma.hbm_to_vmem [thread:$0]  %s2, 1024, %s44, [#allocation6], 512, 512, 32
    $region13: #{tpu_custom_call.1} parent=1 // pred_fallthru
      _
    // Predicated region
    $region14: #{tpu_custom_call.1} parent=1 // pred_check
      _
    $region15: #{tpu_custom_call.1} parent=1 // pred_check_branch
      %51 = sbr.rel (0) target = $region17
    $region16: #{tpu_custom_call.1} parent=1 // pred_region
      _
    $region17: #{tpu_custom_call.1} parent=1 // pred_fallthru
      _
    // Predicated region
    $region18: #{tpu_custom_call.1} parent=1 // pred_check
      _
    $region19: #{tpu_custom_call.1} parent=1 // pred_check_branch
      %53 = sbr.rel (0) target = $region21
    $region20: #{tpu_custom_call.1} parent=1 // pred_region
      %s55 = ssub.s32 24576, 24576
      %56 = vsyncadd [#allocation9], %s55
      %s57 = sshll.u32 [#allocation8], 4
      %s58 = int_to_ptr.vmem [resolvable:$true] %s57
      %63 = dma.hbm_to_vmem [thread:$0]  %s4, 24576, %s58, [#allocation9], 384, 384, 24
    $region21: #{tpu_custom_call.1} parent=1 // pred_fallthru
      _
    // Predicated region
    $region22: #{tpu_custom_call.1} parent=1 // pred_check
      _
    $region23: #{tpu_custom_call.1} parent=1 // pred_check_branch
      %65 = sbr.rel (0) target = $region25
    $region24: #{tpu_custom_call.1} parent=1 // pred_region
      _
    $region25: #{tpu_custom_call.1} parent=1 // pred_fallthru
      _
    // Predicated region
    $region26: #{tpu_custom_call.1} parent=1 // pred_check
      _
    $region27: #{tpu_custom_call.1} parent=1 // pred_check_branch
      %67 = sbr.rel (0) target = $region29
    $region28: #{tpu_custom_call.1} parent=1 // pred_region
      _
    $region29: #{tpu_custom_call.1} parent=1 // pred_fallthru
      _
    // Predicated region
    $region30: #{tpu_custom_call.1} parent=1 // pred_check
      _
    $region31: #{tpu_custom_call.1} parent=1 // pred_check_branch
      %69 = sbr.rel (0) target = $region33
    $region32: #{tpu_custom_call.1} parent=1 // pred_region
      _
    $region33: #{tpu_custom_call.1} parent=1 // pred_fallthru
      _
    // Predicated region
    $region34: #{tpu_custom_call.1} parent=1 // pred_check
      _
    $region35: #{tpu_custom_call.1} parent=1 // pred_check_branch
      %71 = sbr.rel (0) target = $region37
    $region36: #{tpu_custom_call.1} parent=1 // pred_region
      %72 = dma.done [#allocation4], 128
    $region37: #{tpu_custom_call.1} parent=1 // pred_fallthru
      _
    // Predicated region
    $region38: #{tpu_custom_call.1} parent=1 // pred_check
      _
    $region39: #{tpu_custom_call.1} parent=1 // pred_check_branch
      %74 = sbr.rel (0) target = $region41
    $region40: #{tpu_custom_call.1} parent=1 // pred_region
      %75 = dma.done [#allocation6], 512
    $region41: #{tpu_custom_call.1} parent=1 // pred_fallthru
      _
    // Predicated region
    $region42: #{tpu_custom_call.1} parent=1 // pred_check
      _
    $region43: #{tpu_custom_call.1} parent=1 // pred_check_branch
      %77 = sbr.rel (0) target = $region45
    $region44: #{tpu_custom_call.1} parent=1 // pred_region
      %78 = dma.done [#allocation6], 1024
    $region45: #{tpu_custom_call.1} parent=1 // pred_fallthru
      _
    // Predicated region
    $region46: #{tpu_custom_call.1} parent=1 // pred_check
      _
    $region47: #{tpu_custom_call.1} parent=1 // pred_check_branch
      %80 = sbr.rel (0) target = $region49
    $region48: #{tpu_custom_call.1} parent=1 // pred_region
      %81 = dma.done [#allocation9], 24576
    $region49: #{tpu_custom_call.1} parent=1 // pred_fallthru
      _
    %v82 = vld [vmem:[#allocation3] sm:$0xff]
    %v83 = vld [vmem:[#allocation7] sm:$0xff]
    %v84 = vld [vmem:[#allocation7 + $0x8] sm:$0xff]
    %v85 = vld [vmem:[#allocation7 + $0x10] sm:$0xff]
    %v86 = vld [vmem:[#allocation7 + $0x18] sm:$0xff]
    %v87 = vld [vmem:[#allocation7 + $0x20] sm:$0xff]
    %v88 = vld [vmem:[#allocation7 + $0x28] sm:$0xff]
    %v89 = vld [vmem:[#allocation7 + $0x30] sm:$0xff]
    %v90 = vld [vmem:[#allocation7 + $0x38] sm:$0xff]
    %v91 = vld [vmem:[%s3] sm:$0xf]
    %v93 = vlaneseq
    %v94 = vshrl.u32 %v93, 7
    %v95 = vsub.s32 0, %v94
    %v96 = vrot.slane %v91, %v95
    %v97 = vlaneseq
    %v98 = vshrl.u32 %v97, 7
    %v99 = vsub.s32 1, %v98
    %v100 = vrot.slane %v91, %v99
    %v101 = vlaneseq
    %v102 = vshrl.u32 %v101, 7
    %v103 = vsub.s32 2, %v102
    %v104 = vrot.slane %v91, %v103
    %v105 = vlaneseq
    %v106 = vshrl.u32 %v105, 7
    %v107 = vsub.s32 3, %v106
    %v108 = vrot.slane %v91, %v107
    %vm113 = vcmask 130048
    %v115 = vsel %vm113, %v82, 0
    %117 = vmatprep.subr.mxu0 0.0
    %118 = vmatpush1.msra.mxu0 0.0
    %119 = vmatprep.subr.mxu0 0.0
    %120 = vmatpush1.msra.mxu0 0.0
    %121 = vmatprep.subr.mxu0 0.0
    %122 = vmatpush1.msra.mxu0 0.0
    %123 = vmatprep.subr.mxu0 0.0
    %124 = vmatpush1.msra.mxu0 0.0
    %125 = vmatprep.subr.mxu0 0.0
    %126 = vmatpush1.msra.mxu0 0.0
    %127 = vmatprep.subr.mxu0 0.0
    %128 = vmatpush1.msra.mxu0 0.0
    %129 = vmatprep.subr.mxu0 0.0
    %130 = vmatpush1.msra.mxu0 0.0
    %131 = vmatprep.subr.mxu0 0.0
    %132 = vmatpush1.msra.mxu0 0.0
    %133 = vmatprep.subr.mxu0 0.0
    %134 = vmatpush1.msra.mxu0 0.0
    %135 = vmatprep.subr.mxu0 0.0
    %136 = vmatpush1.msra.mxu0 0.0
    %137 = vmatprep.subr.mxu0 0.0
    %138 = vmatpush1.msra.mxu0 0.0
    %139 = vmatprep.subr.mxu0 0.0
    %140 = vmatpush1.msra.mxu0 0.0
    %141 = vmatprep.subr.mxu0 0.0
    %142 = vmatpush1.msra.mxu0 0.0
    %143 = vmatprep.subr.mxu0 0.0
    %144 = vmatpush1.msra.mxu0 0.0
    %145 = vmatprep.subr.mxu0 %v88
    %146 = vmatpush1.msra.mxu0 %v87
    %147 = vmatprep.subr.mxu0 %v84
    %148 = vmatpush1.msra.mxu0 %v83
    %149 = vmatprep.subr.mxu0 0.0
    %150 = vmatpush2.msra.mxu0 0.0
    %151 = vmatprep.subr.mxu0 0.0
    %152 = vmatpush2.msra.mxu0 0.0
    %153 = vmatprep.subr.mxu0 0.0
    %154 = vmatpush2.msra.mxu0 0.0
    %155 = vmatprep.subr.mxu0 0.0
    %156 = vmatpush2.msra.mxu0 0.0
    %157 = vmatprep.subr.mxu0 0.0
    %158 = vmatpush2.msra.mxu0 0.0
    %159 = vmatprep.subr.mxu0 0.0
    %160 = vmatpush2.msra.mxu0 0.0
    %161 = vmatprep.subr.mxu0 0.0
    %162 = vmatpush2.msra.mxu0 0.0
    %163 = vmatprep.subr.mxu0 0.0
    %164 = vmatpush2.msra.mxu0 0.0
    %165 = vmatprep.subr.mxu0 0.0
    %166 = vmatpush2.msra.mxu0 0.0
    %167 = vmatprep.subr.mxu0 0.0
    %168 = vmatpush2.msra.mxu0 0.0
    %169 = vmatprep.subr.mxu0 0.0
    %170 = vmatpush2.msra.mxu0 0.0
    %171 = vmatprep.subr.mxu0 0.0
    %172 = vmatpush2.msra.mxu0 0.0
    %173 = vmatprep.subr.mxu0 0.0
    %174 = vmatpush2.msra.mxu0 0.0
    %175 = vmatprep.subr.mxu0 0.0
    %176 = vmatpush2.msra.mxu0 0.0
    %177 = vmatprep.subr.mxu0 0.0
    %178 = vmatpush2.msra.mxu0 0.0
    %179 = vmatprep.subr.mxu0 0.0
    %180 = vmatpush2.msra.mxu0 0.0
    %181 = vmatprep.mubr.f32.mxu0 0.0
    %182 = vmatmul.mubr.f32.gmra.mxu0 %v115
    %v183 = vpop.f32.mrf.mxu0
    %v184 = vadd.f32 %v96, %v183
    %v185 = vpop.f32.mrf.mxu0
    %v186 = vadd.f32 %v100, %v185
    %187 = vdwg.mxu0
    %188 = vmatprep.subr.mxu0 0.0
    %189 = vmatpush1.msra.mxu0 0.0
    %190 = vmatprep.subr.mxu0 0.0
    %191 = vmatpush1.msra.mxu0 0.0
    %192 = vmatprep.subr.mxu0 0.0
    %193 = vmatpush1.msra.mxu0 0.0
    %194 = vmatprep.subr.mxu0 0.0
    %195 = vmatpush1.msra.mxu0 0.0
    %196 = vmatprep.subr.mxu0 0.0
    %197 = vmatpush1.msra.mxu0 0.0
    %198 = vmatprep.subr.mxu0 0.0
    %199 = vmatpush1.msra.mxu0 0.0
    %200 = vmatprep.subr.mxu0 0.0
    %201 = vmatpush1.msra.mxu0 0.0
    %202 = vmatprep.subr.mxu0 0.0
    %203 = vmatpush1.msra.mxu0 0.0
    %204 = vmatprep.subr.mxu0 0.0
    %205 = vmatpush1.msra.mxu0 0.0
    %206 = vmatprep.subr.mxu0 0.0
    %207 = vmatpush1.msra.mxu0 0.0
    %208 = vmatprep.subr.mxu0 0.0
    %209 = vmatpush1.msra.mxu0 0.0
    %210 = vmatprep.subr.mxu0 0.0
    %211 = vmatpush1.msra.mxu0 0.0
    %212 = vmatprep.subr.mxu0 0.0
    %213 = vmatpush1.msra.mxu0 0.0
    %214 = vmatprep.subr.mxu0 0.0
    %215 = vmatpush1.msra.mxu0 0.0
    %216 = vmatprep.subr.mxu0 %v90
    %217 = vmatpush1.msra.mxu0 %v89
    %218 = vmatprep.subr.mxu0 %v86
    %219 = vmatpush1.msra.mxu0 %v85
    %220 = vmatprep.subr.mxu0 0.0
    %221 = vmatpush2.msra.mxu0 0.0
    %222 = vmatprep.subr.mxu0 0.0
    %223 = vmatpush2.msra.mxu0 0.0
    %224 = vmatprep.subr.mxu0 0.0
    %225 = vmatpush2.msra.mxu0 0.0
    %226 = vmatprep.subr.mxu0 0.0
    %227 = vmatpush2.msra.mxu0 0.0
    %228 = vmatprep.subr.mxu0 0.0
    %229 = vmatpush2.msra.mxu0 0.0
    %230 = vmatprep.subr.mxu0 0.0
    %231 = vmatpush2.msra.mxu0 0.0
    %232 = vmatprep.subr.mxu0 0.0
    %233 = vmatpush2.msra.mxu0 0.0
    %234 = vmatprep.subr.mxu0 0.0
    %235 = vmatpush2.msra.mxu0 0.0
    %236 = vmatprep.subr.mxu0 0.0
    %237 = vmatpush2.msra.mxu0 0.0
    %238 = vmatprep.subr.mxu0 0.0
    %239 = vmatpush2.msra.mxu0 0.0
    %240 = vmatprep.subr.mxu0 0.0
    %241 = vmatpush2.msra.mxu0 0.0
    %242 = vmatprep.subr.mxu0 0.0
    %243 = vmatpush2.msra.mxu0 0.0
    %244 = vmatprep.subr.mxu0 0.0
    %245 = vmatpush2.msra.mxu0 0.0
    %246 = vmatprep.subr.mxu0 0.0
    %247 = vmatpush2.msra.mxu0 0.0
    %248 = vmatprep.subr.mxu0 0.0
    %249 = vmatpush2.msra.mxu0 0.0
    %250 = vmatprep.subr.mxu0 0.0
    %251 = vmatpush2.msra.mxu0 0.0
    %252 = vmatprep.mubr.f32.mxu0 0.0
    %253 = vmatmul.mubr.f32.gmra.mxu0 %v115
    %v254 = vpop.f32.mrf.mxu0
    %v255 = vadd.f32 %v104, %v254
    %v256 = vpop.f32.mrf.mxu0
    %v257 = vadd.f32 %v108, %v256
    %258 = vdwg.mxu0
    %v259 = vmax.f32 %v184, 0.0
    %v260 = vmax.f32 %v186, 0.0
    %v261 = vmax.f32 %v255, 0.0
    %v262 = vmax.f32 %v257, 0.0
    %v263 = vld [vmem:[#allocation5] sm:$0xff]
    %v264 = vld [vmem:[#allocation5 + $0x8] sm:$0xff]
    %v265 = vld [vmem:[#allocation5 + $0x10] sm:$0xff]
    %v266 = vld [vmem:[#allocation5 + $0x18] sm:$0xff]
    %v267 = vadd.f32 %v259, %v263
    %v268 = vadd.f32 %v260, %v264
    %v269 = vadd.f32 %v261, %v265
    %v270 = vadd.f32 %v262, %v266
    %v271 = vld [vmem:[#allocation8] sm:$0xff]
    %v272 = vld [vmem:[#allocation8 + $0x8] sm:$0xff]
    %v273 = vld [vmem:[#allocation8 + $0x10] sm:$0xff]
    %v274 = vld [vmem:[#allocation8 + $0x18] sm:$0xff]
    %v275 = vld [vmem:[#allocation8 + $0x20] sm:$0xff]
    %v276 = vld [vmem:[#allocation8 + $0x28] sm:$0xff]
    %v277 = vld [vmem:[#allocation8 + $0x30] sm:$0xff]
    %v278 = vld [vmem:[#allocation8 + $0x38] sm:$0xff]
    %v279 = vld [vmem:[#allocation8 + $0x40] sm:$0xff]
    %v280 = vld [vmem:[#allocation8 + $0x48] sm:$0xff]
    %v281 = vld [vmem:[#allocation8 + $0x50] sm:$0xff]
    %v282 = vld [vmem:[#allocation8 + $0x58] sm:$0xff]
    %v283 = vld [vmem:[#allocation8 + $0x60] sm:$0xff]
    %v284 = vld [vmem:[#allocation8 + $0x68] sm:$0xff]
    %v285 = vld [vmem:[#allocation8 + $0x70] sm:$0xff]
    %v286 = vld [vmem:[#allocation8 + $0x78] sm:$0xff]
    %v287 = vld [vmem:[#allocation8 + $0x80] sm:$0xff]
    %v288 = vld [vmem:[#allocation8 + $0x88] sm:$0xff]
    %v289 = vld [vmem:[#allocation8 + $0x90] sm:$0xff]
    %v290 = vld [vmem:[#allocation8 + $0x98] sm:$0xff]
    %v291 = vld [vmem:[#allocation8 + $0xa0] sm:$0xff]
    %v292 = vld [vmem:[#allocation8 + $0xa8] sm:$0xff]
    %v293 = vld [vmem:[#allocation8 + $0xb0] sm:$0xff]
    %v294 = vld [vmem:[#allocation8 + $0xb8] sm:$0xff]
    %v295 = vld [vmem:[#allocation8 + $0xc0] sm:$0xff]
    %v296 = vld [vmem:[#allocation8 + $0xc8] sm:$0xff]
    %v297 = vld [vmem:[#allocation8 + $0xd0] sm:$0xff]
    %v298 = vld [vmem:[#allocation8 + $0xd8] sm:$0xff]
    %v299 = vld [vmem:[#allocation8 + $0xe0] sm:$0xff]
    %v300 = vld [vmem:[#allocation8 + $0xe8] sm:$0xff]
    %v301 = vld [vmem:[#allocation8 + $0xf0] sm:$0xff]
    %v302 = vld [vmem:[#allocation8 + $0xf8] sm:$0xff]
    %v303 = vld [vmem:[#allocation8 + $0x100] sm:$0xff]
    %v304 = vld [vmem:[#allocation8 + $0x108] sm:$0xff]
    %v305 = vld [vmem:[#allocation8 + $0x110] sm:$0xff]
    %v306 = vld [vmem:[#allocation8 + $0x118] sm:$0xff]
    %v307 = vld [vmem:[#allocation8 + $0x120] sm:$0xff]
    %v308 = vld [vmem:[#allocation8 + $0x128] sm:$0xff]
    %v309 = vld [vmem:[#allocation8 + $0x130] sm:$0xff]
    %v310 = vld [vmem:[#allocation8 + $0x138] sm:$0xff]
    %v311 = vld [vmem:[#allocation8 + $0x140] sm:$0xff]
    %v312 = vld [vmem:[#allocation8 + $0x148] sm:$0xff]
    %v313 = vld [vmem:[#allocation8 + $0x150] sm:$0xff]
    %v314 = vld [vmem:[#allocation8 + $0x158] sm:$0xff]
    %v315 = vld [vmem:[#allocation8 + $0x160] sm:$0xff]
    %v316 = vld [vmem:[#allocation8 + $0x168] sm:$0xff]
    %v317 = vld [vmem:[#allocation8 + $0x170] sm:$0xff]
    %v318 = vld [vmem:[#allocation8 + $0x178] sm:$0xff]
    %v319 = vld [vmem:[#allocation8 + $0x180] sm:$0xff]
    %v320 = vld [vmem:[#allocation8 + $0x188] sm:$0xff]
    %v321 = vld [vmem:[#allocation8 + $0x190] sm:$0xff]
    %v322 = vld [vmem:[#allocation8 + $0x198] sm:$0xff]
    %v323 = vld [vmem:[#allocation8 + $0x1a0] sm:$0xff]
    %v324 = vld [vmem:[#allocation8 + $0x1a8] sm:$0xff]
    %v325 = vld [vmem:[#allocation8 + $0x1b0] sm:$0xff]
    %v326 = vld [vmem:[#allocation8 + $0x1b8] sm:$0xff]
    %v327 = vld [vmem:[#allocation8 + $0x1c0] sm:$0xff]
    %v328 = vld [vmem:[#allocation8 + $0x1c8] sm:$0xff]
    %v329 = vld [vmem:[#allocation8 + $0x1d0] sm:$0xff]
    %v330 = vld [vmem:[#allocation8 + $0x1d8] sm:$0xff]
    %v331 = vld [vmem:[#allocation8 + $0x1e0] sm:$0xff]
    %v332 = vld [vmem:[#allocation8 + $0x1e8] sm:$0xff]
    %v333 = vld [vmem:[#allocation8 + $0x1f0] sm:$0xff]
    %v334 = vld [vmem:[#allocation8 + $0x1f8] sm:$0xff]
    %v335 = vld [vmem:[#allocation8 + $0x200] sm:$0xff]
    %v336 = vld [vmem:[#allocation8 + $0x208] sm:$0xff]
    %v337 = vld [vmem:[#allocation8 + $0x210] sm:$0xff]
    %v338 = vld [vmem:[#allocation8 + $0x218] sm:$0xff]
    %v339 = vld [vmem:[#allocation8 + $0x220] sm:$0xff]
    %v340 = vld [vmem:[#allocation8 + $0x228] sm:$0xff]
    %v341 = vld [vmem:[#allocation8 + $0x230] sm:$0xff]
    %v342 = vld [vmem:[#allocation8 + $0x238] sm:$0xff]
    %v343 = vld [vmem:[#allocation8 + $0x240] sm:$0xff]
    %v344 = vld [vmem:[#allocation8 + $0x248] sm:$0xff]
    %v345 = vld [vmem:[#allocation8 + $0x250] sm:$0xff]
    %v346 = vld [vmem:[#allocation8 + $0x258] sm:$0xff]
    %v347 = vld [vmem:[#allocation8 + $0x260] sm:$0xff]
    %v348 = vld [vmem:[#allocation8 + $0x268] sm:$0xff]
    %v349 = vld [vmem:[#allocation8 + $0x270] sm:$0xff]
    %v350 = vld [vmem:[#allocation8 + $0x278] sm:$0xff]
    %v351 = vld [vmem:[#allocation8 + $0x280] sm:$0xff]
    %v352 = vld [vmem:[#allocation8 + $0x288] sm:$0xff]
    %v353 = vld [vmem:[#allocation8 + $0x290] sm:$0xff]
    %v354 = vld [vmem:[#allocation8 + $0x298] sm:$0xff]
    %v355 = vld [vmem:[#allocation8 + $0x2a0] sm:$0xff]
    %v356 = vld [vmem:[#allocation8 + $0x2a8] sm:$0xff]
    %v357 = vld [vmem:[#allocation8 + $0x2b0] sm:$0xff]
    %v358 = vld [vmem:[#allocation8 + $0x2b8] sm:$0xff]
    %v359 = vld [vmem:[#allocation8 + $0x2c0] sm:$0xff]
    %v360 = vld [vmem:[#allocation8 + $0x2c8] sm:$0xff]
    %v361 = vld [vmem:[#allocation8 + $0x2d0] sm:$0xff]
    %v362 = vld [vmem:[#allocation8 + $0x2d8] sm:$0xff]
    %v363 = vld [vmem:[#allocation8 + $0x2e0] sm:$0xff]
    %v364 = vld [vmem:[#allocation8 + $0x2e8] sm:$0xff]
    %v365 = vld [vmem:[#allocation8 + $0x2f0] sm:$0xff]
    %v366 = vld [vmem:[#allocation8 + $0x2f8] sm:$0xff]
    %v367 = vld [vmem:[#allocation8 + $0x300] sm:$0xff]
    %v368 = vld [vmem:[#allocation8 + $0x308] sm:$0xff]
    %v369 = vld [vmem:[#allocation8 + $0x310] sm:$0xff]
    %v370 = vld [vmem:[#allocation8 + $0x318] sm:$0xff]
    %v371 = vld [vmem:[#allocation8 + $0x320] sm:$0xff]
    %v372 = vld [vmem:[#allocation8 + $0x328] sm:$0xff]
    %v373 = vld [vmem:[#allocation8 + $0x330] sm:$0xff]
    %v374 = vld [vmem:[#allocation8 + $0x338] sm:$0xff]
    %v375 = vld [vmem:[#allocation8 + $0x340] sm:$0xff]
    %v376 = vld [vmem:[#allocation8 + $0x348] sm:$0xff]
    %v377 = vld [vmem:[#allocation8 + $0x350] sm:$0xff]
    %v378 = vld [vmem:[#allocation8 + $0x358] sm:$0xff]
    %v379 = vld [vmem:[#allocation8 + $0x360] sm:$0xff]
    %v380 = vld [vmem:[#allocation8 + $0x368] sm:$0xff]
    %v381 = vld [vmem:[#allocation8 + $0x370] sm:$0xff]
    %v382 = vld [vmem:[#allocation8 + $0x378] sm:$0xff]
    %v383 = vld [vmem:[#allocation8 + $0x380] sm:$0xff]
    %v384 = vld [vmem:[#allocation8 + $0x388] sm:$0xff]
    %v385 = vld [vmem:[#allocation8 + $0x390] sm:$0xff]
    %v386 = vld [vmem:[#allocation8 + $0x398] sm:$0xff]
    %v387 = vld [vmem:[#allocation8 + $0x3a0] sm:$0xff]
    %v388 = vld [vmem:[#allocation8 + $0x3a8] sm:$0xff]
    %v389 = vld [vmem:[#allocation8 + $0x3b0] sm:$0xff]
    %v390 = vld [vmem:[#allocation8 + $0x3b8] sm:$0xff]
    %v391 = vld [vmem:[#allocation8 + $0x3c0] sm:$0xff]
    %v392 = vld [vmem:[#allocation8 + $0x3c8] sm:$0xff]
    %v393 = vld [vmem:[#allocation8 + $0x3d0] sm:$0xff]
    %v394 = vld [vmem:[#allocation8 + $0x3d8] sm:$0xff]
    %v395 = vld [vmem:[#allocation8 + $0x3e0] sm:$0xff]
    %v396 = vld [vmem:[#allocation8 + $0x3e8] sm:$0xff]
    %v397 = vld [vmem:[#allocation8 + $0x3f0] sm:$0xff]
    %v398 = vld [vmem:[#allocation8 + $0x3f8] sm:$0xff]
    %v399 = vld [vmem:[#allocation8 + $0x400] sm:$0xff]
    %v400 = vld [vmem:[#allocation8 + $0x408] sm:$0xff]
    %v401 = vld [vmem:[#allocation8 + $0x410] sm:$0xff]
    %v402 = vld [vmem:[#allocation8 + $0x418] sm:$0xff]
    %v403 = vld [vmem:[#allocation8 + $0x420] sm:$0xff]
    %v404 = vld [vmem:[#allocation8 + $0x428] sm:$0xff]
    %v405 = vld [vmem:[#allocation8 + $0x430] sm:$0xff]
    %v406 = vld [vmem:[#allocation8 + $0x438] sm:$0xff]
    %v407 = vld [vmem:[#allocation8 + $0x440] sm:$0xff]
    %v408 = vld [vmem:[#allocation8 + $0x448] sm:$0xff]
    %v409 = vld [vmem:[#allocation8 + $0x450] sm:$0xff]
    %v410 = vld [vmem:[#allocation8 + $0x458] sm:$0xff]
    %v411 = vld [vmem:[#allocation8 + $0x460] sm:$0xff]
    %v412 = vld [vmem:[#allocation8 + $0x468] sm:$0xff]
    %v413 = vld [vmem:[#allocation8 + $0x470] sm:$0xff]
    %v414 = vld [vmem:[#allocation8 + $0x478] sm:$0xff]
    %v415 = vld [vmem:[#allocation8 + $0x480] sm:$0xff]
    %v416 = vld [vmem:[#allocation8 + $0x488] sm:$0xff]
    %v417 = vld [vmem:[#allocation8 + $0x490] sm:$0xff]
    %v418 = vld [vmem:[#allocation8 + $0x498] sm:$0xff]
    %v419 = vld [vmem:[#allocation8 + $0x4a0] sm:$0xff]
    %v420 = vld [vmem:[#allocation8 + $0x4a8] sm:$0xff]
    %v421 = vld [vmem:[#allocation8 + $0x4b0] sm:$0xff]
    %v422 = vld [vmem:[#allocation8 + $0x4b8] sm:$0xff]
    %v423 = vld [vmem:[#allocation8 + $0x4c0] sm:$0xff]
    %v424 = vld [vmem:[#allocation8 + $0x4c8] sm:$0xff]
    %v425 = vld [vmem:[#allocation8 + $0x4d0] sm:$0xff]
    %v426 = vld [vmem:[#allocation8 + $0x4d8] sm:$0xff]
    %v427 = vld [vmem:[#allocation8 + $0x4e0] sm:$0xff]
    %v428 = vld [vmem:[#allocation8 + $0x4e8] sm:$0xff]
    %v429 = vld [vmem:[#allocation8 + $0x4f0] sm:$0xff]
    %v430 = vld [vmem:[#allocation8 + $0x4f8] sm:$0xff]
    %v431 = vld [vmem:[#allocation8 + $0x500] sm:$0xff]
    %v432 = vld [vmem:[#allocation8 + $0x508] sm:$0xff]
    %v433 = vld [vmem:[#allocation8 + $0x510] sm:$0xff]
    %v434 = vld [vmem:[#allocation8 + $0x518] sm:$0xff]
    %v435 = vld [vmem:[#allocation8 + $0x520] sm:$0xff]
    %v436 = vld [vmem:[#allocation8 + $0x528] sm:$0xff]
    %v437 = vld [vmem:[#allocation8 + $0x530] sm:$0xff]
    %v438 = vld [vmem:[#allocation8 + $0x538] sm:$0xff]
    %v439 = vld [vmem:[#allocation8 + $0x540] sm:$0xff]
    %v440 = vld [vmem:[#allocation8 + $0x548] sm:$0xff]
    %v441 = vld [vmem:[#allocation8 + $0x550] sm:$0xff]
    %v442 = vld [vmem:[#allocation8 + $0x558] sm:$0xff]
    %v443 = vld [vmem:[#allocation8 + $0x560] sm:$0xff]
    %v444 = vld [vmem:[#allocation8 + $0x568] sm:$0xff]
    %v445 = vld [vmem:[#allocation8 + $0x570] sm:$0xff]
    %v446 = vld [vmem:[#allocation8 + $0x578] sm:$0xff]
    %v447 = vld [vmem:[#allocation8 + $0x580] sm:$0xff]
    %v448 = vld [vmem:[#allocation8 + $0x588] sm:$0xff]
    %v449 = vld [vmem:[#allocation8 + $0x590] sm:$0xff]
    %v450 = vld [vmem:[#allocation8 + $0x598] sm:$0xff]
    %v451 = vld [vmem:[#allocation8 + $0x5a0] sm:$0xff]
    %v452 = vld [vmem:[#allocation8 + $0x5a8] sm:$0xff]
    %v453 = vld [vmem:[#allocation8 + $0x5b0] sm:$0xff]
    %v454 = vld [vmem:[#allocation8 + $0x5b8] sm:$0xff]
    %v455 = vld [vmem:[#allocation8 + $0x5c0] sm:$0xff]
    %v456 = vld [vmem:[#allocation8 + $0x5c8] sm:$0xff]
    %v457 = vld [vmem:[#allocation8 + $0x5d0] sm:$0xff]
    %v458 = vld [vmem:[#allocation8 + $0x5d8] sm:$0xff]
    %v459 = vld [vmem:[#allocation8 + $0x5e0] sm:$0xff]
    %v460 = vld [vmem:[#allocation8 + $0x5e8] sm:$0xff]
    %v461 = vld [vmem:[#allocation8 + $0x5f0] sm:$0xff]
    %v462 = vld [vmem:[#allocation8 + $0x5f8] sm:$0xff]
    %v463 = vld [vmem:[%s5] sm:$0x7]
    %v465 = vlaneseq
    %v466 = vshrl.u32 %v465, 7
    %v467 = vsub.s32 0, %v466
    %v468 = vrot.slane %v463, %v467
    %v469 = vlaneseq
    %v470 = vshrl.u32 %v469, 7
    %v471 = vsub.s32 1, %v470
    %v472 = vrot.slane %v463, %v471
    %v473 = vlaneseq
    %v474 = vshrl.u32 %v473, 7
    %v475 = vsub.s32 2, %v474
    %v476 = vrot.slane %v463, %v475
    %480 = vmatprep.subr.mxu0 %v317
    %481 = vmatpush1.msra.mxu0 %v316
    %482 = vmatprep.subr.mxu0 %v314
    %483 = vmatpush1.msra.mxu0 %v313
    %484 = vmatprep.subr.mxu0 %v311
    %485 = vmatpush1.msra.mxu0 %v310
    %486 = vmatprep.subr.mxu0 %v308
    %487 = vmatpush1.msra.mxu0 %v307
    %488 = vmatprep.subr.mxu0 %v305
    %489 = vmatpush1.msra.mxu0 %v304
    %490 = vmatprep.subr.mxu0 %v302
    %491 = vmatpush1.msra.mxu0 %v301
    %492 = vmatprep.subr.mxu0 %v299
    %493 = vmatpush1.msra.mxu0 %v298
    %494 = vmatprep.subr.mxu0 %v296
    %495 = vmatpush1.msra.mxu0 %v295
    %496 = vmatprep.subr.mxu0 %v293
    %497 = vmatpush1.msra.mxu0 %v292
    %498 = vmatprep.subr.mxu0 %v290
    %499 = vmatpush1.msra.mxu0 %v289
    %500 = vmatprep.subr.mxu0 %v287
    %501 = vmatpush1.msra.mxu0 %v286
    %502 = vmatprep.subr.mxu0 %v284
    %503 = vmatpush1.msra.mxu0 %v283
    %504 = vmatprep.subr.mxu0 %v281
    %505 = vmatpush1.msra.mxu0 %v280
    %506 = vmatprep.subr.mxu0 %v278
    %507 = vmatpush1.msra.mxu0 %v277
    %508 = vmatprep.subr.mxu0 %v275
    %509 = vmatpush1.msra.mxu0 %v274
    %510 = vmatprep.subr.mxu0 %v272
    %511 = vmatpush1.msra.mxu0 %v271
    %512 = vmatprep.subr.mxu0 %v365
    %513 = vmatpush2.msra.mxu0 %v364
    %514 = vmatprep.subr.mxu0 %v362
    %515 = vmatpush2.msra.mxu0 %v361
    %516 = vmatprep.subr.mxu0 %v359
    %517 = vmatpush2.msra.mxu0 %v358
    %518 = vmatprep.subr.mxu0 %v356
    %519 = vmatpush2.msra.mxu0 %v355
    %520 = vmatprep.subr.mxu0 %v353
    %521 = vmatpush2.msra.mxu0 %v352
    %522 = vmatprep.subr.mxu0 %v350
    %523 = vmatpush2.msra.mxu0 %v349
    %524 = vmatprep.subr.mxu0 %v347
    %525 = vmatpush2.msra.mxu0 %v346
    %526 = vmatprep.subr.mxu0 %v344
    %527 = vmatpush2.msra.mxu0 %v343
    %528 = vmatprep.subr.mxu0 %v341
    %529 = vmatpush2.msra.mxu0 %v340
    %530 = vmatprep.subr.mxu0 %v338
    %531 = vmatpush2.msra.mxu0 %v337
    %532 = vmatprep.subr.mxu0 %v335
    %533 = vmatpush2.msra.mxu0 %v334
    %534 = vmatprep.subr.mxu0 %v332
    %535 = vmatpush2.msra.mxu0 %v331
    %536 = vmatprep.subr.mxu0 %v329
    %537 = vmatpush2.msra.mxu0 %v328
    %538 = vmatprep.subr.mxu0 %v326
    %539 = vmatpush2.msra.mxu0 %v325
    %540 = vmatprep.subr.mxu0 %v323
    %541 = vmatpush2.msra.mxu0 %v322
    %542 = vmatprep.subr.mxu0 %v320
    %543 = vmatpush2.msra.mxu0 %v319
    %544 = vmatprep.mubr.f32.mxu0 %v268
    %545 = vmatmul.mubr.f32.gmra.mxu0 %v267
    %v546 = vpop.f32.mrf.mxu0
    %v547 = vadd.f32 %v468, %v546
    %v548 = vpop.f32.mrf.mxu0
    %v549 = vadd.f32 %v472, %v548
    %550 = vdwg.mxu0
    %551 = vmatprep.subr.mxu0 %v413
    %552 = vmatpush1.msra.mxu0 %v412
    %553 = vmatprep.subr.mxu0 %v410
    %554 = vmatpush1.msra.mxu0 %v409
    %555 = vmatprep.subr.mxu0 %v407
    %556 = vmatpush1.msra.mxu0 %v406
    %557 = vmatprep.subr.mxu0 %v404
    %558 = vmatpush1.msra.mxu0 %v403
    %559 = vmatprep.subr.mxu0 %v401
    %560 = vmatpush1.msra.mxu0 %v400
    %561 = vmatprep.subr.mxu0 %v398
    %562 = vmatpush1.msra.mxu0 %v397
    %563 = vmatprep.subr.mxu0 %v395
    %564 = vmatpush1.msra.mxu0 %v394
    %565 = vmatprep.subr.mxu0 %v392
    %566 = vmatpush1.msra.mxu0 %v391
    %567 = vmatprep.subr.mxu0 %v389
    %568 = vmatpush1.msra.mxu0 %v388
    %569 = vmatprep.subr.mxu0 %v386
    %570 = vmatpush1.msra.mxu0 %v385
    %571 = vmatprep.subr.mxu0 %v383
    %572 = vmatpush1.msra.mxu0 %v382
    %573 = vmatprep.subr.mxu0 %v380
    %574 = vmatpush1.msra.mxu0 %v379
    %575 = vmatprep.subr.mxu0 %v377
    %576 = vmatpush1.msra.mxu0 %v376
    %577 = vmatprep.subr.mxu0 %v374
    %578 = vmatpush1.msra.mxu0 %v373
    %579 = vmatprep.subr.mxu0 %v371
    %580 = vmatpush1.msra.mxu0 %v370
    %581 = vmatprep.subr.mxu0 %v368
    %582 = vmatpush1.msra.mxu0 %v367
    %583 = vmatprep.subr.mxu0 %v461
    %584 = vmatpush2.msra.mxu0 %v460
    %585 = vmatprep.subr.mxu0 %v458
    %586 = vmatpush2.msra.mxu0 %v457
    %587 = vmatprep.subr.mxu0 %v455
    %588 = vmatpush2.msra.mxu0 %v454
    %589 = vmatprep.subr.mxu0 %v452
    %590 = vmatpush2.msra.mxu0 %v451
    %591 = vmatprep.subr.mxu0 %v449
    %592 = vmatpush2.msra.mxu0 %v448
    %593 = vmatprep.subr.mxu0 %v446
    %594 = vmatpush2.msra.mxu0 %v445
    %595 = vmatprep.subr.mxu0 %v443
    %596 = vmatpush2.msra.mxu0 %v442
    %597 = vmatprep.subr.mxu0 %v440
    %598 = vmatpush2.msra.mxu0 %v439
    %599 = vmatprep.subr.mxu0 %v437
    %600 = vmatpush2.msra.mxu0 %v436
    %601 = vmatprep.subr.mxu0 %v434
    %602 = vmatpush2.msra.mxu0 %v433
    %603 = vmatprep.subr.mxu0 %v431
    %604 = vmatpush2.msra.mxu0 %v430
    %605 = vmatprep.subr.mxu0 %v428
    %606 = vmatpush2.msra.mxu0 %v427
    %607 = vmatprep.subr.mxu0 %v425
    %608 = vmatpush2.msra.mxu0 %v424
    %609 = vmatprep.subr.mxu0 %v422
    %610 = vmatpush2.msra.mxu0 %v421
    %611 = vmatprep.subr.mxu0 %v419
    %612 = vmatpush2.msra.mxu0 %v418
    %613 = vmatprep.subr.mxu0 %v416
    %614 = vmatpush2.msra.mxu0 %v415
    %615 = vmatprep.mubr.f32.mxu0 %v270
    %616 = vmatmul.mubr.f32.gmra.mxu0 %v269
    %v617 = vpop.f32.mrf.mxu0
    %v618 = vadd.f32 %v547, %v617
    %v619 = vpop.f32.mrf.mxu0
    %v620 = vadd.f32 %v549, %v619
    %621 = vdwg.mxu0
    %622 = vmatprep.subr.mxu0 0.0
    %623 = vmatpush1.msra.mxu0 %v318
    %624 = vmatprep.subr.mxu0 0.0
    %625 = vmatpush1.msra.mxu0 %v315
    %626 = vmatprep.subr.mxu0 0.0
    %627 = vmatpush1.msra.mxu0 %v312
    %628 = vmatprep.subr.mxu0 0.0
    %629 = vmatpush1.msra.mxu0 %v309
    %630 = vmatprep.subr.mxu0 0.0
    %631 = vmatpush1.msra.mxu0 %v306
    %632 = vmatprep.subr.mxu0 0.0
    %633 = vmatpush1.msra.mxu0 %v303
    %634 = vmatprep.subr.mxu0 0.0
    %635 = vmatpush1.msra.mxu0 %v300
    %636 = vmatprep.subr.mxu0 0.0
    %637 = vmatpush1.msra.mxu0 %v297
    %638 = vmatprep.subr.mxu0 0.0
    %639 = vmatpush1.msra.mxu0 %v294
    %640 = vmatprep.subr.mxu0 0.0
    %641 = vmatpush1.msra.mxu0 %v291
    %642 = vmatprep.subr.mxu0 0.0
    %643 = vmatpush1.msra.mxu0 %v288
    %644 = vmatprep.subr.mxu0 0.0
    %645 = vmatpush1.msra.mxu0 %v285
    %646 = vmatprep.subr.mxu0 0.0
    %647 = vmatpush1.msra.mxu0 %v282
    %648 = vmatprep.subr.mxu0 0.0
    %649 = vmatpush1.msra.mxu0 %v279
    %650 = vmatprep.subr.mxu0 0.0
    %651 = vmatpush1.msra.mxu0 %v276
    %652 = vmatprep.subr.mxu0 0.0
    %653 = vmatpush1.msra.mxu0 %v273
    %654 = vmatprep.subr.mxu0 0.0
    %655 = vmatpush2.msra.mxu0 %v366
    %656 = vmatprep.subr.mxu0 0.0
    %657 = vmatpush2.msra.mxu0 %v363
    %658 = vmatprep.subr.mxu0 0.0
    %659 = vmatpush2.msra.mxu0 %v360
    %660 = vmatprep.subr.mxu0 0.0
    %661 = vmatpush2.msra.mxu0 %v357
    %662 = vmatprep.subr.mxu0 0.0
    %663 = vmatpush2.msra.mxu0 %v354
    %664 = vmatprep.subr.mxu0 0.0
    %665 = vmatpush2.msra.mxu0 %v351
    %666 = vmatprep.subr.mxu0 0.0
    %667 = vmatpush2.msra.mxu0 %v348
    %668 = vmatprep.subr.mxu0 0.0
    %669 = vmatpush2.msra.mxu0 %v345
    %670 = vmatprep.subr.mxu0 0.0
    %671 = vmatpush2.msra.mxu0 %v342
    %672 = vmatprep.subr.mxu0 0.0
    %673 = vmatpush2.msra.mxu0 %v339
    %674 = vmatprep.subr.mxu0 0.0
    %675 = vmatpush2.msra.mxu0 %v336
    %676 = vmatprep.subr.mxu0 0.0
    %677 = vmatpush2.msra.mxu0 %v333
    %678 = vmatprep.subr.mxu0 0.0
    %679 = vmatpush2.msra.mxu0 %v330
    %680 = vmatprep.subr.mxu0 0.0
    %681 = vmatpush2.msra.mxu0 %v327
    %682 = vmatprep.subr.mxu0 0.0
    %683 = vmatpush2.msra.mxu0 %v324
    %684 = vmatprep.subr.mxu0 0.0
    %685 = vmatpush2.msra.mxu0 %v321
    %686 = vmatprep.mubr.f32.mxu0 %v268
    %687 = vmatmul.mubr.f32.gmra.mxu0 %v267
    %v688 = vpop.f32.mrf.mxu0
    %v689 = vadd.f32 %v476, %v688
    %v690 = vpop.f32.mrf.mxu0
    %691 = vdwg.mxu0
    %692 = vmatprep.subr.mxu0 0.0
    %693 = vmatpush1.msra.mxu0 %v414
    %694 = vmatprep.subr.mxu0 0.0
    %695 = vmatpush1.msra.mxu0 %v411
    %696 = vmatprep.subr.mxu0 0.0
    %697 = vmatpush1.msra.mxu0 %v408
    %698 = vmatprep.subr.mxu0 0.0
    %699 = vmatpush1.msra.mxu0 %v405
    %700 = vmatprep.subr.mxu0 0.0
    %701 = vmatpush1.msra.mxu0 %v402
    %702 = vmatprep.subr.mxu0 0.0
    %703 = vmatpush1.msra.mxu0 %v399
    %704 = vmatprep.subr.mxu0 0.0
    %705 = vmatpush1.msra.mxu0 %v396
    %706 = vmatprep.subr.mxu0 0.0
    %707 = vmatpush1.msra.mxu0 %v393
    %708 = vmatprep.subr.mxu0 0.0
    %709 = vmatpush1.msra.mxu0 %v390
    %710 = vmatprep.subr.mxu0 0.0
    %711 = vmatpush1.msra.mxu0 %v387
    %712 = vmatprep.subr.mxu0 0.0
    %713 = vmatpush1.msra.mxu0 %v384
    %714 = vmatprep.subr.mxu0 0.0
    %715 = vmatpush1.msra.mxu0 %v381
    %716 = vmatprep.subr.mxu0 0.0
    %717 = vmatpush1.msra.mxu0 %v378
    %718 = vmatprep.subr.mxu0 0.0
    %719 = vmatpush1.msra.mxu0 %v375
    %720 = vmatprep.subr.mxu0 0.0
    %721 = vmatpush1.msra.mxu0 %v372
    %722 = vmatprep.subr.mxu0 0.0
    %723 = vmatpush1.msra.mxu0 %v369
    %724 = vmatprep.subr.mxu0 0.0
    %725 = vmatpush2.msra.mxu0 %v462
    %726 = vmatprep.subr.mxu0 0.0
    %727 = vmatpush2.msra.mxu0 %v459
    %728 = vmatprep.subr.mxu0 0.0
    %729 = vmatpush2.msra.mxu0 %v456
    %730 = vmatprep.subr.mxu0 0.0
    %731 = vmatpush2.msra.mxu0 %v453
    %732 = vmatprep.subr.mxu0 0.0
    %733 = vmatpush2.msra.mxu0 %v450
    %734 = vmatprep.subr.mxu0 0.0
    %735 = vmatpush2.msra.mxu0 %v447
    %736 = vmatprep.subr.mxu0 0.0
    %737 = vmatpush2.msra.mxu0 %v444
    %738 = vmatprep.subr.mxu0 0.0
    %739 = vmatpush2.msra.mxu0 %v441
    %740 = vmatprep.subr.mxu0 0.0
    %741 = vmatpush2.msra.mxu0 %v438
    %742 = vmatprep.subr.mxu0 0.0
    %743 = vmatpush2.msra.mxu0 %v435
    %744 = vmatprep.subr.mxu0 0.0
    %745 = vmatpush2.msra.mxu0 %v432
    %746 = vmatprep.subr.mxu0 0.0
    %747 = vmatpush2.msra.mxu0 %v429
    %748 = vmatprep.subr.mxu0 0.0
    %749 = vmatpush2.msra.mxu0 %v426
    %750 = vmatprep.subr.mxu0 0.0
    %751 = vmatpush2.msra.mxu0 %v423
    %752 = vmatprep.subr.mxu0 0.0
    %753 = vmatpush2.msra.mxu0 %v420
    %754 = vmatprep.subr.mxu0 0.0
    %755 = vmatpush2.msra.mxu0 %v417
    %756 = vmatprep.mubr.f32.mxu0 %v270
    %757 = vmatmul.mubr.f32.gmra.mxu0 %v269
    %v758 = vpop.f32.mrf.mxu0
    %v759 = vadd.f32 %v689, %v758
    %v760 = vpop.f32.mrf.mxu0
    %761 = vdwg.mxu0
    %v762 = vmax.f32 %v618, 0.0
    %v763 = vmax.f32 %v620, 0.0
    %v764 = vmax.f32 %v759, 0.0
    %v765 = vld [vmem:[%s6] sm:$0x7]
    %v767 = vlaneseq
    %v768 = vshrl.u32 %v767, 7
    %v769 = vsub.s32 0, %v768
    %v770 = vrot.slane %v765, %v769
    %v771 = vlaneseq
    %v772 = vshrl.u32 %v771, 7
    %v773 = vsub.s32 1, %v772
    %v774 = vrot.slane %v765, %v773
    %v775 = vlaneseq
    %v776 = vshrl.u32 %v775, 7
    %v777 = vsub.s32 2, %v776
    %v778 = vrot.slane %v765, %v777
    %v782 = vmul.f32 %v762, %v770
    %v783 = vmul.f32 %v763, %v774
    %v784 = vmul.f32 %v764, %v778
    %v785 = vadd.f32 %v782, %v783
    %v786 = vadd.f32 %v785, %v784
    %787 = vadd.xlane.f32.xlu0 %v786
    %v788 = vpop.xlane.xlu0 %787
    %v789 = vld [vmem:[#allocation2] sm:$0x1]
    %v791 = vlaneseq
    %v792 = vshrl.u32 %v791, 7
    %v793 = vsub.s32 0, %v792
    %v794 = vrot.slane %v789, %v793
    %v796 = vadd.f32 %v788, %v794
    %vm797 = vcmask 7168
    %798 = vst.msk [vmem:[%s8] sm:$0xff] %vm797, %v796
    // Predicated region
    $region50: #{tpu_custom_call.1} parent=1 // pred_check
      _
    $region51: #{tpu_custom_call.1} parent=1 // pred_check_branch
      %800 = sbr.rel (0) target = $region53
    $region52: #{tpu_custom_call.1} parent=1 // pred_region
      _
    $region53: #{tpu_custom_call.1} parent=1 // pred_fallthru
      _
    // Predicated region
    $region54: #{tpu_custom_call.1} parent=1 // pred_check
      _
    $region55: #{tpu_custom_call.1} parent=1 // pred_check_branch
      %802 = sbr.rel (0) target = $region57
    $region56: #{tpu_custom_call.1} parent=1 // pred_region
      _
    $region57: #{tpu_custom_call.1} parent=1 // pred_fallthru
      _
    %803 = vsyncpa [#allocation4], 1
    %804 = vsyncpa [#allocation6], 1
    %805 = vsyncpa [#allocation9], 1

</llo_original>
